<compile_context>
chip_gen: v5e
topology: v5e:2x2
jax: 0.10.0
libtpu: 0.0.40
codegen_flags: <defaults>
</compile_context>

<pallas_src>
import jax
import jax.numpy as jnp
from jax.experimental import pallas as pl
from jax.experimental.pallas import tpu as pltpu


def mlp_kernel(x_ref, w1_ref, b1_ref, w2_ref, b2_ref, o_ref):
    # fc1 + ReLU (f32 accumulation on the MXU)
    h = jnp.dot(x_ref[...], w1_ref[...], preferred_element_type=jnp.float32)
    h = jnp.maximum(h + b1_ref[...], 0.0)
    # fc2 (narrow N == nb_action; output written un-padded)
    q = jnp.dot(h, w2_ref[...], preferred_element_type=jnp.float32)
    o_ref[...] = (q + b2_ref[...]).astype(o_ref.dtype)


def _round_up(x, m):
    return ((x + m - 1) // m) * m


def prepare_params(w1, b1, w2, b2):
    """One-time (init-time) parameter packing for the kernel.

    hidden (30) is zero-padded to 32 (sublane-aligned). The padding is exact:
    ReLU(0 + 0) = 0 feeds zero rows of W2, contributing nothing. The action
    dim is left un-padded so the kernel's output writeback stays slim.
    """
    hidden = w1.shape[1]
    h_pad = _round_up(hidden, 8)
    w1p = jnp.pad(w1, ((0, 0), (0, h_pad - hidden)))
    b1p = jnp.pad(b1, (0, h_pad - hidden)).reshape(1, h_pad)
    w2p = jnp.pad(w2, ((0, h_pad - hidden), (0, 0)))
    b2p = b2.reshape(1, -1)
    return w1p, b1p, w2p, b2p


def network_forward(state, params, *, block_b=4096):
    """Pallas equivalent of Network.forward.

    state:  (B, input_size) f32
    params: output of prepare_params() -- padded/packed weights & biases
    returns q_values: (B, nb_action) f32
    """
    w1p, b1p, w2p, b2p = params
    B, input_size = state.shape
    h_pad = w1p.shape[1]
    nb_action = w2p.shape[1]

    block_b = _round_up(max(block_b, 8), 8)

    if B <= block_b:
        # Single grid step: tile == full batch (legal even if B % 8 != 0),
        # no state padding, no output slicing.
        tb = B
        b_pad = B
        x = state
    else:
        tb = block_b
        b_pad = _round_up(B, tb)
        x = state if b_pad == B else jnp.pad(state, ((0, b_pad - B), (0, 0)))

    out = pl.pallas_call(
        mlp_kernel,
        out_shape=jax.ShapeDtypeStruct((b_pad, nb_action), jnp.float32),
        grid_spec=pl.GridSpec(
            grid=(b_pad // tb,),
            in_specs=[
                # streamed: one batch tile per grid step (double-buffered)
                pl.BlockSpec((tb, input_size), lambda i: (i, 0)),
                # resident: constant block index -> fetched once, kept in VMEM
                pl.BlockSpec((input_size, h_pad), lambda i: (0, 0)),
                pl.BlockSpec((1, h_pad), lambda i: (0, 0)),
                pl.BlockSpec((h_pad, nb_action), lambda i: (0, 0)),
                pl.BlockSpec((1, nb_action), lambda i: (0, 0)),
            ],
            out_specs=pl.BlockSpec((tb, nb_action), lambda i: (i, 0)),
        ),
        compiler_params=pltpu.CompilerParams(
            dimension_semantics=("parallel",)),
    )(x, w1p, b1p, w2p, b2p)

    return out if b_pad == B else out[:B]


def init_params(key, input_size, nb_action, hidden=30):
    """Deterministic init matching nn.Linear (weights stored transposed)."""
    k1, k2, k3, k4 = jax.random.split(key, 4)
    lim1 = 1.0 / (input_size ** 0.5)
    lim2 = 1.0 / (hidden ** 0.5)
    w1 = jax.random.uniform(k1, (input_size, hidden), jnp.float32, -lim1, lim1)
    b1 = jax.random.uniform(k2, (hidden,), jnp.float32, -lim1, lim1)
    w2 = jax.random.uniform(k3, (hidden, nb_action), jnp.float32, -lim2, lim2)
    b2 = jax.random.uniform(k4, (nb_action,), jnp.float32, -lim2, lim2)
    return w1, b1, w2, b2


def _reference(state, w1, b1, w2, b2):
    return jnp.maximum(state @ w1 + b1[None, :], 0.0) @ w2 + b2[None, :]


if __name__ == "__main__":
    key = jax.random.PRNGKey(0)
    kp, kx1, kx2, kx3 = jax.random.split(key, 4)

    input_size = 8
    nb_action = 4
    w1, b1, w2, b2 = init_params(kp, input_size, nb_action)
    params = prepare_params(w1, b1, w2, b2)  # hoisted out of the hot path

    # Case 1: tiny online-RL batch (single grid step).
    # TODO(synk): at B=8 this workload is launch/dispatch bound; in production
    # the 2-layer MLP should be fused into the surrounding jitted JAX graph
    # rather than run as a standalone Pallas call (Pallas only pays off on
    # replay-sized batches).
    state = jax.random.normal(kx1, (8, input_size), jnp.float32)
    q = jax.block_until_ready(network_forward(state, params))
    ref = _reference(state, w1, b1, w2, b2)
    assert q.shape == (8, nb_action)
    assert jnp.allclose(q, ref, atol=1e-4, rtol=1e-4)

    # Case 2: replay-style batch, still one grid step (no wasted per-step
    # overhead, no state padding, no output slicing).
    state2 = jax.random.normal(kx2, (256, input_size), jnp.float32)
    q2 = jax.block_until_ready(network_forward(state2, params))
    ref2 = _reference(state2, w1, b1, w2, b2)
    assert q2.shape == (256, nb_action)
    assert jnp.allclose(q2, ref2, atol=1e-4, rtol=1e-4)

    # Case 3: larger ragged batch exercising the tiled path (2 batch tiles ->
    # resident weights across steps, "parallel" axis can shard across the two
    # TensorCores on v7x) and the pad/slice path for B % tb != 0.
    state3 = jax.random.normal(kx3, (1000, input_size), jnp.float32)
    q3 = jax.block_until_ready(network_forward(state3, params, block_b=512))
    ref3 = _reference(state3, w1, b1, w2, b2)
    assert q3.shape == (1000, nb_action)
    assert jnp.allclose(q3, ref3, atol=1e-4, rtol=1e-4)

    print("KERNEL_OK")
</pallas_src>

<mosaic_0001>
module attributes {stable_mosaic.version = 11 : i64} {
  func.func @mlp_kernel(%arg0: i32, %arg1: memref<8x8xf32, #tpu.memory_space<vmem>>, %arg2: memref<8x32xf32, #tpu.memory_space<vmem>>, %arg3: memref<1x32xf32, #tpu.memory_space<vmem>>, %arg4: memref<32x4xf32, #tpu.memory_space<vmem>>, %arg5: memref<1x4xf32, #tpu.memory_space<vmem>>, %arg6: memref<8x4xf32, #tpu.memory_space<vmem>>) attributes {dimension_semantics = [#tpu.dimension_semantics<parallel>], iteration_bounds = array<i64: 1>, scalar_prefetch = 0 : i64, scratch_operands = 0 : i64, tpu.core_type = #tpu.core_type<tc>, window_params = [{transform_indices = @transform_0, window_bounds = array<i64: 8, 8>}, {pipeline_mode = #tpu.pipeline_mode<synchronous>, transform_indices = @transform_1, window_bounds = array<i64: 8, 32>}, {pipeline_mode = #tpu.pipeline_mode<synchronous>, transform_indices = @transform_2, window_bounds = array<i64: 1, 32>}, {pipeline_mode = #tpu.pipeline_mode<synchronous>, transform_indices = @transform_3, window_bounds = array<i64: 32, 4>}, {pipeline_mode = #tpu.pipeline_mode<synchronous>, transform_indices = @transform_4, window_bounds = array<i64: 1, 4>}, {transform_indices = @transform_5, window_bounds = array<i64: 8, 4>}]} {
    %c0 = arith.constant 0 : index
    %c0_0 = arith.constant 0 : index
    %0 = vector.load %arg1[%c0, %c0_0] : memref<8x8xf32, #tpu.memory_space<vmem>>, vector<8x8xf32>
    %c0_1 = arith.constant 0 : index
    %c0_2 = arith.constant 0 : index
    %1 = vector.load %arg2[%c0_1, %c0_2] : memref<8x32xf32, #tpu.memory_space<vmem>>, vector<8x32xf32>
    %cst = arith.constant dense<0.000000e+00> : vector<8x32xf32>
    %2 = tpu.matmul %0, %1, %cst {dimension_numbers = #tpu.dot_dimension_numbers<[1], [0], [0], [1], [0, 0, 1, 1], [], []>} : vector<8x8xf32>, vector<8x32xf32>, vector<8x32xf32> -> vector<8x32xf32>
    %c0_3 = arith.constant 0 : index
    %c0_4 = arith.constant 0 : index
    %3 = vector.load %arg3[%c0_3, %c0_4] : memref<1x32xf32, #tpu.memory_space<vmem>>, vector<1x32xf32>
    %4 = vector.broadcast %3 : vector<1x32xf32> to vector<8x32xf32>
    %5 = arith.addf %2, %4 : vector<8x32xf32>
    %cst_5 = arith.constant 0.000000e+00 : f32
    %6 = vector.broadcast %cst_5 : f32 to vector<8x32xf32>
    %7 = arith.maximumf %5, %6 : vector<8x32xf32>
    %c0_6 = arith.constant 0 : index
    %c0_7 = arith.constant 0 : index
    %8 = vector.load %arg4[%c0_6, %c0_7] : memref<32x4xf32, #tpu.memory_space<vmem>>, vector<32x4xf32>
    %cst_8 = arith.constant dense<0.000000e+00> : vector<8x4xf32>
    %9 = tpu.matmul %7, %8, %cst_8 {dimension_numbers = #tpu.dot_dimension_numbers<[1], [0], [0], [1], [0, 0, 1, 1], [], []>} : vector<8x32xf32>, vector<32x4xf32>, vector<8x4xf32> -> vector<8x4xf32>
    %c0_9 = arith.constant 0 : index
    %c0_10 = arith.constant 0 : index
    %10 = vector.load %arg5[%c0_9, %c0_10] : memref<1x4xf32, #tpu.memory_space<vmem>>, vector<1x4xf32>
    %11 = vector.broadcast %10 : vector<1x4xf32> to vector<8x4xf32>
    %12 = arith.addf %9, %11 : vector<8x4xf32>
    %c0_11 = arith.constant 0 : index
    %c0_12 = arith.constant 0 : index
    %13 = vector.load %arg6[%c0_11, %c0_12] : memref<8x4xf32, #tpu.memory_space<vmem>>, vector<8x4xf32>
    tpu.vector_store %arg6[%c0_11, %c0_12], %12 {strides = array<i32>} : memref<8x4xf32, #tpu.memory_space<vmem>>, vector<8x4xf32>,
    return
  }
  func.func @transform_0(%arg0: i32) -> (i32, i32) {
    %c0_i32 = arith.constant 0 : i32
    %c0_i32_0 = arith.constant 0 : i32
    return %arg0, %c0_i32 : i32, i32
  }
  func.func @transform_1(%arg0: i32) -> (i32, i32) {
    %c0_i32 = arith.constant 0 : i32
    %c0_i32_0 = arith.constant 0 : i32
    %c0_i32_1 = arith.constant 0 : i32
    return %c0_i32, %c0_i32_0 : i32, i32
  }
  func.func @transform_2(%arg0: i32) -> (i32, i32) {
    %c0_i32 = arith.constant 0 : i32
    %c0_i32_0 = arith.constant 0 : i32
    %c0_i32_1 = arith.constant 0 : i32
    return %c0_i32, %c0_i32_0 : i32, i32
  }
  func.func @transform_3(%arg0: i32) -> (i32, i32) {
    %c0_i32 = arith.constant 0 : i32
    %c0_i32_0 = arith.constant 0 : i32
    %c0_i32_1 = arith.constant 0 : i32
    return %c0_i32, %c0_i32_0 : i32, i32
  }
  func.func @transform_4(%arg0: i32) -> (i32, i32) {
    %c0_i32 = arith.constant 0 : i32
    %c0_i32_0 = arith.constant 0 : i32
    %c0_i32_1 = arith.constant 0 : i32
    return %c0_i32, %c0_i32_0 : i32, i32
  }
  func.func @transform_5(%arg0: i32) -> (i32, i32) {
    %c0_i32 = arith.constant 0 : i32
    %c0_i32_0 = arith.constant 0 : i32
    return %arg0, %c0_i32 : i32, i32
  }
}

</mosaic_0001>

<llo_original>
// kernel: tpu_custom_call.1
$region0: #{tpu_custom_call.1}
  #allocation0 [shape = 'u32[]', space=smem, size = 0x4, offset = 0x4, fixed_abs, tag = 'smem constant byte address 0x4 - core index']
  #allocation1 [shape = 'u32[72,128]{1,0:T(1,128)}', space=vmem, size = 0x9000, scoped, tag = 'internal scratch']
  %s0 = inlined_call_operand.vmem [shape: f32[8,8], index: 0, kind: input, shape index: {}]
  %s1 = inlined_call_operand.vmem [shape: f32[8,32], index: 1, kind: input, shape index: {}]
  %s2 = inlined_call_operand.vmem [shape: f32[1,32], index: 2, kind: input, shape index: {}]
  %s3 = inlined_call_operand.vmem [shape: f32[32,4], index: 3, kind: input, shape index: {}]
  %s4 = inlined_call_operand.vmem [shape: f32[1,4], index: 4, kind: input, shape index: {}]
  %s5 = inlined_call_operand.vmem [shape: f32[8,4], index: 5, kind: output, shape index: {}]
  %s6 = sld [smem:[#allocation0]]
  $region30: #{tpu_custom_call.1} parent=0
    _
  %s8 = ssub.s32 1, %s6
  %s9 = scalar_select 0, %s8, %s6
  // Predicated region
  $region2: #{tpu_custom_call.1} parent=0 // pred_check
    _
  $region3: #{tpu_custom_call.1} parent=0 // pred_check_branch
    %11 = sbr.rel (0) target = $region5
  $region4: #{tpu_custom_call.1} parent=0 // pred_region
    _
  $region5: #{tpu_custom_call.1} parent=0 // pred_fallthru
    _
  // Predicated region
  $region6: #{tpu_custom_call.1} parent=0 // pred_check
    _
  $region7: #{tpu_custom_call.1} parent=0 // pred_check_branch
    %13 = sbr.rel (0) target = $region9
  $region8: #{tpu_custom_call.1} parent=0 // pred_region
    _
  $region9: #{tpu_custom_call.1} parent=0 // pred_fallthru
    _
  // Predicated region
  $region10: #{tpu_custom_call.1} parent=0 // pred_check
    _
  $region11: #{tpu_custom_call.1} parent=0 // pred_check_branch
    %15 = sbr.rel (0) target = $region13
  $region12: #{tpu_custom_call.1} parent=0 // pred_region
    _
  $region13: #{tpu_custom_call.1} parent=0 // pred_fallthru
    _
  // Predicated region
  $region14: #{tpu_custom_call.1} parent=0 // pred_check
    _
  $region15: #{tpu_custom_call.1} parent=0 // pred_check_branch
    %17 = sbr.rel (0) target = $region17
  $region16: #{tpu_custom_call.1} parent=0 // pred_region
    _
  $region17: #{tpu_custom_call.1} parent=0 // pred_fallthru
    _
  // Predicated region
  $region18: #{tpu_custom_call.1} parent=0 // pred_check
    _
  $region19: #{tpu_custom_call.1} parent=0 // pred_check_branch
    %19 = sbr.rel (0) target = $region21
  $region20: #{tpu_custom_call.1} parent=0 // pred_region
    _
  $region21: #{tpu_custom_call.1} parent=0 // pred_fallthru
    _
  %v20 = vld [vmem:[%s0] sm:$0xff]
  %v21 = vld [vmem:[%s1] sm:$0xff]
  %v22 = vld [vmem:[%s2] sm:$0x1]
  %v24 = vperm.slane %v22, 0
  %vm26 = vcmask 64512
  %v28 = vsel %vm26, %v20, 0
  %30 = vmatpush.msra.mxu0 0.0
  %31 = vmatpush.msra.mxu0 0.0
  %32 = vmatpush.msra.mxu0 0.0
  %33 = vmatpush.msra.mxu0 0.0
  %34 = vmatpush.msra.mxu0 0.0
  %35 = vmatpush.msra.mxu0 0.0
  %36 = vmatpush.msra.mxu0 0.0
  %37 = vmatpush.msra.mxu0 0.0
  %38 = vmatpush.msra.mxu0 0.0
  %39 = vmatpush.msra.mxu0 0.0
  %40 = vmatpush.msra.mxu0 0.0
  %41 = vmatpush.msra.mxu0 0.0
  %42 = vmatpush.msra.mxu0 0.0
  %43 = vmatpush.msra.mxu0 0.0
  %44 = vmatpush.msra.mxu0 0.0
  %45 = vmatpush.msra.mxu0 %v21
  %46 = vmatmul.f32.gmra.mxu0 %v28
  %v47 = vpop.f32.mrf.mxu0
  %v48 = vadd.f32 %v24, %v47
  %49 = vdwg.mxu0
  %v50 = vmax.f32 %v48, 0.0
  %v51 = vld [vmem:[%s3] sm:$0xff]
  %v52 = vld [vmem:[%s3 + $0x8] sm:$0xff]
  %v53 = vld [vmem:[%s3 + $0x10] sm:$0xff]
  %v54 = vld [vmem:[%s3 + $0x18] sm:$0xff]
  %v55 = vld [vmem:[%s4] sm:$0x1]
  %v57 = vperm.slane %v55, 0
  %vm59 = vcmask 261120
  %v61 = vsel %vm59, %v50, 0
  %63 = vmatpush.msra.mxu0 0.0
  %64 = vmatpush.msra.mxu0 0.0
  %65 = vmatpush.msra.mxu0 0.0
  %66 = vmatpush.msra.mxu0 0.0
  %67 = vmatpush.msra.mxu0 0.0
  %68 = vmatpush.msra.mxu0 0.0
  %69 = vmatpush.msra.mxu0 0.0
  %70 = vmatpush.msra.mxu0 0.0
  %71 = vmatpush.msra.mxu0 0.0
  %72 = vmatpush.msra.mxu0 0.0
  %73 = vmatpush.msra.mxu0 0.0
  %74 = vmatpush.msra.mxu0 0.0
  %75 = vmatpush.msra.mxu0 %v54
  %76 = vmatpush.msra.mxu0 %v53
  %77 = vmatpush.msra.mxu0 %v52
  %78 = vmatpush.msra.mxu0 %v51
  %79 = vmatmul.f32.gmra.mxu0 %v61
  %v80 = vpop.f32.mrf.mxu0
  %v81 = vadd.f32 %v57, %v80
  %82 = vdwg.mxu0
  %vm83 = vcmask 31744
  %84 = vst.msk [vmem:[%s5] sm:$0xff] %vm83, %v81
  // Predicated region
  $region22: #{tpu_custom_call.1} parent=0 // pred_check
    _
  $region23: #{tpu_custom_call.1} parent=0 // pred_check_branch
    %86 = sbr.rel (0) target = $region25
  $region24: #{tpu_custom_call.1} parent=0 // pred_region
    _
  $region25: #{tpu_custom_call.1} parent=0 // pred_fallthru
    _
  // Predicated region
  $region26: #{tpu_custom_call.1} parent=0 // pred_check
    _
  $region27: #{tpu_custom_call.1} parent=0 // pred_check_branch
    %88 = sbr.rel (0) target = $region29
  $region28: #{tpu_custom_call.1} parent=0 // pred_region
    _
  $region29: #{tpu_custom_call.1} parent=0 // pred_fallthru
    _

</llo_original>
